<compile_context>
chip_gen: v7x
topology: tpu7x:2x2x1
jax: 0.10.0
libtpu: 0.0.40
codegen_flags: <defaults>
</compile_context>

<pallas_src>
import functools

import jax
import jax.numpy as jnp
from jax.experimental import pallas as pl
from jax.experimental.pallas import tpu as pltpu

_X_BLOCK_BUDGET = 8 * 1024 * 1024   # bytes per (double-buffered) x input block


# ----------------------------- tiling helpers --------------------------------

def _sublane_align(itemsize):
    # f32 -> 8, bf16 -> 16, int8/fp8 -> 32 (packed rows per sublane).
    return max(8, 32 // int(itemsize))


def _divisor_tile(n, align, cap):
    """Largest t with n % t == 0, t % align == 0 and t <= cap; None if none."""
    if n % align != 0:
        return None
    cap = min(cap, n)
    t = cap - cap % align
    while t >= align:
        if n % t == 0:
            return t
        t -= align
    return None


def _choose_std_tiles(B, S, H, itemsize, budget):
    """Tiles (bb, ts, th) for the standard path: reduce over hidden, out (B, S)."""
    sub = _sublane_align(itemsize)
    ts_min = _divisor_tile(S, 128, 128) or S
    bb_min = _divisor_tile(B, sub, sub) or B
    # 1) hidden (reduction / x-lane) tile: take the whole extent when it fits
    #    -> single pipeline step, fully contiguous DMA runs.
    if H % 128 != 0 or bb_min * ts_min * H * itemsize <= budget:
        th = H
    else:
        cap = max(128, budget // (bb_min * ts_min * itemsize))
        th = _divisor_tile(H, 128, cap) or H
    # 2) seq tile (lane axis of the output block).
    if S % 128 != 0:
        ts = S
    else:
        cap = max(128, budget // (bb_min * th * itemsize))
        ts = _divisor_tile(S, 128, cap) or S
    # 3) batch tile (sublane axis of the output block).
    if B % sub != 0:
        bb = B
    else:
        cap = max(sub, budget // (ts * th * itemsize))
        bb = _divisor_tile(B, sub, cap) or B
    # Keep >= 2 parallel grid points so v7x's two TensorCores both get work.
    if (B // bb) * (S // ts) < 2:
        if bb % 2 == 0 and bb > sub and (bb // 2) % sub == 0:
            bb //= 2
        elif ts % 2 == 0 and ts > 128 and (ts // 2) % 128 == 0:
            ts //= 2
    return bb, ts, th


def _choose_switch_tiles(B, S, H, itemsize, budget):
    """Tiles (bb, ts, th) for the fused switch_dims path: reduce over seq, out (B, H)."""
    sub = _sublane_align(itemsize)
    th_min = _divisor_tile(H, 128, 128) or H
    bb_min = _divisor_tile(B, sub, sub) or B
    # 1) seq (reduction / x-sublane) tile: whole extent when the budget allows.
    if S % sub != 0 or bb_min * th_min * S * itemsize <= budget:
        ts = S
    else:
        cap = max(sub, budget // (bb_min * th_min * itemsize))
        ts = _divisor_tile(S, sub, cap) or S
    # 2) hidden tile (lane axis of x blocks and of the output).
    if H % 128 != 0:
        th = H
    else:
        cap = max(128, budget // (bb_min * ts * itemsize))
        th = _divisor_tile(H, 128, cap) or H
    # 3) batch tile.
    if B % sub != 0:
        bb = B
    else:
        cap = max(sub, budget // (ts * th * itemsize))
        bb = _divisor_tile(B, sub, cap) or B
    if (B // bb) * (H // th) < 2:
        if bb % 2 == 0 and bb > sub and (bb // 2) % sub == 0:
            bb //= 2
        elif th % 2 == 0 and th > 128 and (th // 2) % 128 == 0:
            th //= 2
    return bb, ts, th


def _compiler_params(x_block_bytes, out_block_bytes, acc_bytes=0, extra_bytes=0):
    # Actual double-buffered footprint + headroom; >= 32 MiB so v5e's 16 MiB
    # scoped default never binds, and well under v7x's 64 MiB physical VMEM
    # for the 8 MiB block budget.
    need = 2 * x_block_bytes + 2 * out_block_bytes + acc_bytes + 2 * extra_bytes
    limit = int(max(32 * 1024 * 1024, 1.25 * need))
    return pltpu.CompilerParams(
        dimension_semantics=("parallel", "parallel", "arbitrary"),
        vmem_limit_bytes=limit)


# ----------------------------- kernel bodies ----------------------------------

def _block_reduce_f32(x, adaption, axis):
    """Per-block reduce with the cast fused in (no full f32 temporary)."""
    if adaption == "max":
        return jnp.max(x, axis=axis).astype(jnp.float32)
    return jnp.sum(x, axis=axis, dtype=jnp.float32)


# --- standard path: reduce / weight over hidden (last axis), output (B, S) ----

def _reduce_h_single_kernel(x_ref, o_ref, *, adaption, inv_n):
    r = _block_reduce_f32(x_ref[...], adaption, axis=2)
    if adaption == "mean":
        r = r * inv_n                              # fold 1/N as a constant mul
    o_ref[...] = r.astype(o_ref.dtype)


def _reduce_h_multi_kernel(x_ref, o_ref, acc_ref, *, adaption, inv_n, th):
    # acc_ref: (bb, ts, 128) f32 -- deferred cross-lane reduce (XLU only at finalize).
    k = pl.program_id(2)

    @pl.when(k == 0)
    def _init():
        if adaption == "max":
            acc_ref[...] = jnp.full_like(acc_ref, -jnp.inf)
        else:
            acc_ref[...] = jnp.zeros_like(acc_ref)

    acc = acc_ref[...]
    for m in range(th // 128):                      # static, 128-lane-aligned slices
        sl = x_ref[:, :, m * 128:(m + 1) * 128].astype(jnp.float32)
        acc = jnp.maximum(acc, sl) if adaption == "max" else acc + sl
    acc_ref[...] = acc

    @pl.when(k == pl.num_programs(2) - 1)
    def _fin():
        a = acc_ref[...]
        r = jnp.max(a, axis=-1) if adaption == "max" else jnp.sum(a, axis=-1)
        if adaption == "mean":
            r = r * inv_n
        o_ref[...] = r.astype(o_ref.dtype)


def _nn_h_single_kernel(x_ref, w_ref, b_ref, o_ref):
    # x_ref: (bb, ts, H)  w_ref: (1, H) in x.dtype (loaded once)  b_ref: (1,) SMEM f32
    y = jnp.sum(x_ref[...] * w_ref[...], axis=-1, dtype=jnp.float32) + b_ref[0]
    o_ref[...] = jnp.maximum(y, 0.0).astype(o_ref.dtype)


def _nn_h_multi_kernel(x_ref, w_ref, b_ref, o_ref, acc_ref, *, th):
    k = pl.program_id(2)

    @pl.when(k == 0)
    def _init():
        acc_ref[...] = jnp.zeros_like(acc_ref)

    acc = acc_ref[...]
    for m in range(th // 128):
        sl = slice(m * 128, (m + 1) * 128)
        acc = acc + (x_ref[:, :, sl] * w_ref[:, sl]).astype(jnp.float32)
    acc_ref[...] = acc

    @pl.when(k == pl.num_programs(2) - 1)
    def _fin():
        y = jnp.sum(acc_ref[...], axis=-1) + b_ref[0]
        o_ref[...] = jnp.maximum(y, 0.0).astype(o_ref.dtype)


# --- fused switch_dims (batch_first=True): reduce / weight over seq, out (B, H) ---

def _reduce_s_single_kernel(x_ref, o_ref, *, adaption, inv_n):
    r = _block_reduce_f32(x_ref[...], adaption, axis=1)
    if adaption == "mean":
        r = r * inv_n
    o_ref[...] = r.astype(o_ref.dtype)


def _reduce_s_multi_kernel(x_ref, o_ref, acc_ref, *, adaption, inv_n):
    k = pl.program_id(2)

    @pl.when(k == 0)
    def _init():
        if adaption == "max":
            acc_ref[...] = jnp.full_like(acc_ref, -jnp.inf)
        else:
            acc_ref[...] = jnp.zeros_like(acc_ref)

    r = _block_reduce_f32(x_ref[...], adaption, axis=1)
    if adaption == "max":
        acc_ref[...] = jnp.maximum(acc_ref[...], r)
    else:
        acc_ref[...] = acc_ref[...] + r

    @pl.when(k == pl.num_programs(2) - 1)
    def _fin():
        r = acc_ref[...]
        if adaption == "mean":
            r = r * inv_n
        o_ref[...] = r.astype(o_ref.dtype)


def _nn_s_single_kernel(x_ref, w_ref, b_ref, o_ref):
    # x_ref: (bb, S, th)  w_ref: (S, 1) in x.dtype (broadcast over lanes)  b_ref: (1,)
    y = jnp.sum(x_ref[...] * w_ref[...], axis=1, dtype=jnp.float32) + b_ref[0]
    o_ref[...] = jnp.maximum(y, 0.0).astype(o_ref.dtype)


def _nn_s_multi_kernel(x_ref, w_ref, b_ref, o_ref, acc_ref):
    k = pl.program_id(2)

    @pl.when(k == 0)
    def _init():
        acc_ref[...] = jnp.zeros_like(acc_ref)

    acc_ref[...] = acc_ref[...] + jnp.sum(
        x_ref[...] * w_ref[...], axis=1, dtype=jnp.float32)

    @pl.when(k == pl.num_programs(2) - 1)
    def _fin():
        y = acc_ref[...] + b_ref[0]
        o_ref[...] = jnp.maximum(y, 0.0).astype(o_ref.dtype)


# ----------------------------- pallas_call wrappers ----------------------------

def _standard_path(x, adaption, nn_params):
    B, S, H = x.shape
    itemsize = jnp.dtype(x.dtype).itemsize
    bb, ts, th = _choose_std_tiles(B, S, H, itemsize, _X_BLOCK_BUDGET)
    nsteps = H // th
    grid = (B // bb, S // ts, nsteps)
    # TODO(synk): consider pipeline_mode=pl.Buffered(3) for shapes forced onto
    # tiny blocks (awkward, non-divisible dims).
    x_spec = pl.BlockSpec((bb, ts, th), lambda i, j, k: (i, j, k))
    o_spec = pl.BlockSpec((bb, ts), lambda i, j, k: (i, j))
    out_shape = jax.ShapeDtypeStruct((B, S), x.dtype)
    x_bytes = bb * ts * th * itemsize
    o_bytes = bb * ts * itemsize

    if adaption in ("sum", "mean", "max"):
        if nsteps == 1:
            kernel = functools.partial(_reduce_h_single_kernel,
                                       adaption=adaption, inv_n=1.0 / H)
            scratch, acc_bytes = [], 0
        else:
            kernel = functools.partial(_reduce_h_multi_kernel,
                                       adaption=adaption, inv_n=1.0 / H, th=th)
            scratch = [pltpu.VMEM((bb, ts, 128), jnp.float32)]
            acc_bytes = bb * ts * 128 * 4
        return pl.pallas_call(
            kernel,
            out_shape=out_shape,
            grid_spec=pltpu.PrefetchScalarGridSpec(
                num_scalar_prefetch=0, grid=grid,
                in_specs=[x_spec], out_specs=o_spec, scratch_shapes=scratch),
            compiler_params=_compiler_params(x_bytes, o_bytes, acc_bytes),
            cost_estimate=pl.CostEstimate(
                flops=B * S * H, transcendentals=0,
                bytes_accessed=B * S * H * itemsize + B * S * itemsize),
        )(x)

    # neural_net: y = relu(x @ w + b) over the hidden axis (VPU mul + lane reduce).
    assert nn_params is not None, "neural_net adaption needs nn_params=(w, b)"
    w, b = nn_params
    w = jnp.reshape(jnp.asarray(w), (1, H)).astype(x.dtype)    # lane-dense weights
    b = jnp.reshape(jnp.asarray(b, jnp.float32), (1,))         # scalar via SMEM
    if nsteps == 1:
        kernel = _nn_h_single_kernel
        w_spec = pl.BlockSpec((1, H), lambda i, j, k: (0, 0))  # loaded once
        scratch, acc_bytes, w_bytes = [], 0, H * itemsize
    else:
        kernel = functools.partial(_nn_h_multi_kernel, th=th)
        w_spec = pl.BlockSpec((1, th), lambda i, j, k: (0, k))
        scratch = [pltpu.VMEM((bb, ts, 128), jnp.float32)]
        acc_bytes, w_bytes = bb * ts * 128 * 4, th * itemsize
    return pl.pallas_call(
        kernel,
        out_shape=out_shape,
        grid_spec=pltpu.PrefetchScalarGridSpec(
            num_scalar_prefetch=0, grid=grid,
            in_specs=[x_spec, w_spec,
                      pl.BlockSpec(memory_space=pltpu.MemorySpace.SMEM)],
            out_specs=o_spec, scratch_shapes=scratch),
        compiler_params=_compiler_params(x_bytes, o_bytes, acc_bytes, w_bytes),
        cost_estimate=pl.CostEstimate(
            flops=2 * B * S * H, transcendentals=0,
            bytes_accessed=B * S * H * itemsize + B * S * itemsize + H * itemsize),
    )(x, w, b)


def _fused_switch_path(x, adaption, nn_params):
    # switch_dims + batch_first=True fused in-kernel: reduce / weight over seq.
    B, S, H = x.shape
    itemsize = jnp.dtype(x.dtype).itemsize
    bb, ts, th = _choose_switch_tiles(B, S, H, itemsize, _X_BLOCK_BUDGET)
    nsteps = S // ts
    grid = (B // bb, H // th, nsteps)
    x_spec = pl.BlockSpec((bb, ts, th), lambda i, j, k: (i, k, j))
    o_spec = pl.BlockSpec((bb, th), lambda i, j, k: (i, j))
    out_shape = jax.ShapeDtypeStruct((B, H), x.dtype)
    x_bytes = bb * ts * th * itemsize
    o_bytes = bb * th * itemsize

    if adaption in ("sum", "mean", "max"):
        if nsteps == 1:
            kernel = functools.partial(_reduce_s_single_kernel,
                                       adaption=adaption, inv_n=1.0 / S)
            scratch, acc_bytes = [], 0
        else:
            kernel = functools.partial(_reduce_s_multi_kernel,
                                       adaption=adaption, inv_n=1.0 / S)
            scratch = [pltpu.VMEM((bb, th), jnp.float32)]
            acc_bytes = bb * th * 4
        return pl.pallas_call(
            kernel,
            out_shape=out_shape,
            grid_spec=pltpu.PrefetchScalarGridSpec(
                num_scalar_prefetch=0, grid=grid,
                in_specs=[x_spec], out_specs=o_spec, scratch_shapes=scratch),
            compiler_params=_compiler_params(x_bytes, o_bytes, acc_bytes),
            cost_estimate=pl.CostEstimate(
                flops=B * S * H, transcendentals=0,
                bytes_accessed=B * S * H * itemsize + B * H * itemsize),
        )(x)

    # neural_net over the post-transpose last axis (= seq): in_size == S.
    assert nn_params is not None, "neural_net adaption needs nn_params=(w, b)"
    w, b = nn_params
    w = jnp.reshape(jnp.asarray(w), (S, 1)).astype(x.dtype)    # broadcast along sublanes
    b = jnp.reshape(jnp.asarray(b, jnp.float32), (1,))
    w_spec = pl.BlockSpec((ts, 1), lambda i, j, k: (k, 0))
    if nsteps == 1:
        kernel = _nn_s_single_kernel
        scratch, acc_bytes = [], 0
    else:
        kernel = _nn_s_multi_kernel
        scratch = [pltpu.VMEM((bb, th), jnp.float32)]
        acc_bytes = bb * th * 4
    return pl.pallas_call(
        kernel,
        out_shape=out_shape,
        grid_spec=pltpu.PrefetchScalarGridSpec(
            num_scalar_prefetch=0, grid=grid,
            in_specs=[x_spec, w_spec,
                      pl.BlockSpec(memory_space=pltpu.MemorySpace.SMEM)],
            out_specs=o_spec, scratch_shapes=scratch),
        compiler_params=_compiler_params(x_bytes, o_bytes, acc_bytes,
                                         ts * itemsize),
        cost_estimate=pl.CostEstimate(
            flops=2 * B * S * H, transcendentals=0,
            bytes_accessed=B * S * H * itemsize + B * H * itemsize + S * itemsize),
    )(x, w, b)


def embedding_adaptor(x, *, adaption="sum", batch_first=True, switch_dims=False,
                      nn_params=None):
    """JAX/Pallas equivalent of EmbeddingAdaptor.forward for 3-D inputs."""
    if adaption not in ("sum", "mean", "max", "neural_net"):
        raise ValueError("Adaptation not in (mean, sum, max, neural_net)")
    if x.ndim != 3:
        raise ValueError("embedding_adaptor kernel expects a 3-D input")

    if switch_dims and batch_first:
        return _fused_switch_path(x, adaption, nn_params)
    if switch_dims:
        # TODO(synk): fuse the batch_first=False transpose into the BlockSpec
        # index_map (needs a per-block 2-D transpose of the reduce result);
        # currently this variant pays one extra HBM round trip for x.
        x = jnp.transpose(x, (2, 1, 0))
    return _standard_path(x, adaption, nn_params)


# ----------------------------- reference ---------------------------------------

def _reference(x, adaption, switch_dims, batch_first, nn_params):
    if switch_dims:
        a = 1 if batch_first else 0
        perm = list(range(x.ndim))
        perm[a], perm[2] = perm[2], perm[a]
        x = jnp.transpose(x, perm)
    xf = x.astype(jnp.float32)
    if adaption == "sum":
        r = jnp.sum(xf, axis=2)
    elif adaption == "mean":
        r = jnp.mean(xf, axis=2)
    elif adaption == "max":
        r = jnp.max(xf, axis=2)
    else:
        w, b = nn_params
        wf = jnp.reshape(jnp.asarray(w, jnp.float32), (x.shape[-1], 1))
        bf = jnp.reshape(jnp.asarray(b, jnp.float32), ())
        r = jnp.squeeze(jnp.maximum(xf @ wf + bf, 0.0), axis=-1)
    return r.astype(x.dtype)


# ----------------------------- main --------------------------------------------

if __name__ == "__main__":
    key = jax.random.PRNGKey(0)
    ok = True

    def check(out, ref, atol, rtol):
        out = jax.block_until_ready(out)
        return (out.shape == ref.shape) and bool(
            jnp.allclose(out.astype(jnp.float32), ref.astype(jnp.float32),
                         atol=atol, rtol=rtol))

    # Small shapes consistent with the module (batch=2, seq=8, hidden=32).
    B, S, H = 2, 8, 32
    kx, kw, kb, kws, k2, k3, k4 = jax.random.split(key, 7)
    x = jax.random.normal(kx, (B, S, H), dtype=jnp.float32)
    w_h = (jax.random.uniform(kw, (H, 1)) - 0.5) * 0.3
    w_s = (jax.random.uniform(kws, (S, 1)) - 0.5) * 0.3
    b = (jax.random.uniform(kb, (1, 1)) - 0.5) * 0.3

    for adaption in ("sum", "mean", "max", "neural_net"):
        out = embedding_adaptor(x, adaption=adaption, nn_params=(w_h, b))
        ref = _reference(x, adaption, False, True, (w_h, b))
        ok &= check(out, ref, 1e-5, 1e-5)

    # switch_dims + batch_first=True (fused in-kernel; neural_net weights over seq).
    for adaption in ("sum", "max", "neural_net"):
        out = embedding_adaptor(x, adaption=adaption, switch_dims=True,
                                nn_params=(w_s, b))
        ref = _reference(x, adaption, True, True, (w_s, b))
        ok &= check(out, ref, 1e-5, 1e-5)

    # switch_dims + batch_first=False (wrapper transpose + standard path).
    out = embedding_adaptor(x, adaption="sum", switch_dims=True, batch_first=False)
    ref = _reference(x, "sum", True, False, None)
    ok &= check(out, ref, 1e-5, 1e-5)

    # Larger single-step shape: full-H blocks, 2x2 parallel grid, ~8 MiB blocks.
    B2, S2, H2 = 16, 512, 1024
    x2 = jax.random.normal(k2, (B2, S2, H2), dtype=jnp.float32)
    w2 = jnp.full((H2, 1), 0.01, jnp.float32)
    w2s = jnp.full((S2, 1), 0.01, jnp.float32)
    b2 = jnp.full((1, 1), 0.1, jnp.float32)
    for adaption in ("sum", "neural_net"):
        out = embedding_adaptor(x2, adaption=adaption, nn_params=(w2, b2))
        ref = _reference(x2, adaption, False, True, (w2, b2))
        ok &= check(out, ref, 1e-3, 1e-4)
    out = embedding_adaptor(x2, adaption="neural_net", switch_dims=True,
                            nn_params=(w2s, b2))
    ref = _reference(x2, "neural_net", True, True, (w2s, b2))
    ok &= check(out, ref, 1e-3, 1e-4)

    # bf16 input (dtype-aware sublane alignment, f32 accumulation).
    xb = x2.astype(jnp.bfloat16)
    out = embedding_adaptor(xb, adaption="sum")
    refb = jnp.sum(xb.astype(jnp.float32), axis=2).astype(jnp.bfloat16)
    ok &= check(out, refb, 0.1, 2e-2)

    # Multi-step reduction over hidden (th < H) -> deferred lane-reduce path.
    B3, S3, H3 = 8, 256, 4096
    x3 = jax.random.normal(k3, (B3, S3, H3), dtype=jnp.float32)
    w3 = jnp.full((H3, 1), 0.01, jnp.float32)
    for adaption in ("mean", "max", "neural_net"):
        out = embedding_adaptor(x3, adaption=adaption, nn_params=(w3, b2))
        ref = _reference(x3, adaption, False, True, (w3, b2))
        ok &= check(out, ref, 1e-3, 1e-4)

    # Multi-step fused switch_dims (ts < S).
    B4, S4, H4 = 8, 4096, 256
    x4 = jax.random.normal(k4, (B4, S4, H4), dtype=jnp.float32)
    w4 = jnp.full((S4, 1), 0.01, jnp.float32)
    for adaption in ("sum", "neural_net"):
        out = embedding_adaptor(x4, adaption=adaption, switch_dims=True,
                                nn_params=(w4, b2))
        ref = _reference(x4, adaption, True, True, (w4, b2))
        ok &= check(out, ref, 1e-3, 1e-4)

    print("KERNEL_OK" if ok else "KERNEL_MISMATCH")
</pallas_src>

<mosaic_0001>
module attributes {stable_mosaic.version = 11 : i64} {
  func.func @_reduce_h_single_kernel(%arg0: i32, %arg1: i32, %arg2: i32, %arg3: memref<2x8x32xf32, #tpu.memory_space<vmem>>, %arg4: memref<2x8xf32, #tpu.memory_space<vmem>>) attributes {dimension_semantics = [#tpu.dimension_semantics<parallel>, #tpu.dimension_semantics<parallel>, #tpu.dimension_semantics<arbitrary>], iteration_bounds = array<i64: 1, 1, 1>, scalar_prefetch = 0 : i64, scratch_operands = 0 : i64, tpu.core_type = #tpu.core_type<tc>, window_params = [{transform_indices = @transform_0, window_bounds = array<i64: 2, 8, 32>}, {transform_indices = @transform_1, window_bounds = array<i64: 2, 8>}]} {
    %c0 = arith.constant 0 : index
    %c0_0 = arith.constant 0 : index
    %c0_1 = arith.constant 0 : index
    %0 = vector.load %arg3[%c0, %c0_0, %c0_1] : memref<2x8x32xf32, #tpu.memory_space<vmem>>, vector<2x8x32xf32>
    %cst = arith.constant dense<0.000000e+00> : vector<2x8xf32>
    %1 = vector.multi_reduction <add>, %0, %cst [2] : vector<2x8x32xf32> to vector<2x8xf32>
    %c0_2 = arith.constant 0 : index
    %c0_3 = arith.constant 0 : index
    %2 = vector.load %arg4[%c0_2, %c0_3] : memref<2x8xf32, #tpu.memory_space<vmem>>, vector<2x8xf32>
    tpu.vector_store %arg4[%c0_2, %c0_3], %1 {strides = array<i32>} : memref<2x8xf32, #tpu.memory_space<vmem>>, vector<2x8xf32>,
    return
  }
  func.func @transform_0(%arg0: i32, %arg1: i32, %arg2: i32) -> (i32, i32, i32) {
    %c0_i32 = arith.constant 0 : i32
    return %arg0, %arg1, %arg2 : i32, i32, i32
  }
  func.func @transform_1(%arg0: i32, %arg1: i32, %arg2: i32) -> (i32, i32) {
    %c0_i32 = arith.constant 0 : i32
    return %arg0, %arg1 : i32, i32
  }
}

</mosaic_0001>

<llo_original>
// kernel: tpu_custom_call.1
$region0: #{tpu_custom_call.1}
  #allocation0 [shape = 'u32[]', space=smem, size = 0x4, offset = 0x4, fixed_abs, tag = 'smem constant byte address 0x4 - core index']
  #allocation1 [shape = 'u32[144,128]{1,0:T(1,128)}', space=vmem, size = 0x12000, scoped, tag = 'internal scratch']
  %s0 = inlined_call_operand.hbm [shape: f32[2,8,32], index: 0, kind: input, shape index: {}]
  %s1 = inlined_call_operand.hbm [shape: f32[2,8], index: 1, kind: output, shape index: {}]
  %s2 = sld [smem:[#allocation0]]
  $region18: #{tpu_custom_call.1} parent=0
    _
  %s4 = ssub.s32 1, %s2
  %s5 = scalar_select 0, %s4, %s2
  $region1: #{tpu_custom_call.1} parent=0
    #allocation2 [shape = 'u8[8192]{0}', space=vmem, size = 0x2000, scoped, tag = 'input window, operand 0, single buffered']
    #allocation3 [shape = 's32[1]{0}', space=sflag, size = 0x4, scoped, tag = 'scoped memory for tpu_custom_call.1']
    #allocation4 [shape = 's32[1]{0}', space=sflag, size = 0x4, scoped, tag = 'scoped memory for tpu_custom_call.1']
    #allocation5 [shape = 'u8[1024]{0}', space=vmem, size = 0x400, scoped, tag = 'output window, operand 0, single buffered']
    %6 = vsyncpa [#allocation3], 0
    %7 = vsyncpa [#allocation4], 0
    // Predicated region
    $region2: #{tpu_custom_call.1} parent=1 // pred_check
      _
    $region3: #{tpu_custom_call.1} parent=1 // pred_check_branch
      %9 = sbr.rel (0) target = $region5
    $region4: #{tpu_custom_call.1} parent=1 // pred_region
      %s11 = ssub.s32 256, 256
      %12 = vsyncadd [#allocation3], %s11
      %s13 = sshll.u32 [#allocation2], 4
      %s14 = int_to_ptr.vmem [resolvable:$true] %s13
      %19 = dma.hbm_to_vmem [thread:$0]  %s0, 256, %s14, [#allocation3], 128, 128, 8
    $region5: #{tpu_custom_call.1} parent=1 // pred_fallthru
      _
    // Predicated region
    $region6: #{tpu_custom_call.1} parent=1 // pred_check
      _
    $region7: #{tpu_custom_call.1} parent=1 // pred_check_branch
      %21 = sbr.rel (0) target = $region9
    $region8: #{tpu_custom_call.1} parent=1 // pred_region
      %22 = dma.done [#allocation3], 256
    $region9: #{tpu_custom_call.1} parent=1 // pred_fallthru
      _
    %v23 = vld [vmem:[#allocation2] sm:$0xff]
    %v24 = vld [vmem:[#allocation2 + $0x8] sm:$0xff]
    %vm25 = vcmask 261120
    %v26 = vsel %vm25, %v23, 0.0
    %27 = vadd.xlane.f32.xlu0 %v26
    %v28 = vpop.xlane.xlu0 %27
    %v29 = vsel %vm25, %v24, 0.0
    %30 = vadd.xlane.f32.xlu0 %v29
    %v31 = vpop.xlane.xlu0 %30
    %v34 = vlaneseq
    %v35 = vand.u32 %v34, 127
    %v36 = vlaneseq
    %v37 = vshrl.u32 %v36, 7
    %v38 = vsub.s32 %v35, %v37
    %v39 = vrot.slane %v28, %v38
    %v40 = vlaneseq
    %v41 = vshrl.u32 %v40, 7
    %v42 = vsub.s32 %v35, %v41
    %v43 = vrot.slane %v31, %v42
    %vm44 = vcmask 1041409
    %v45 = vsel %vm44, %v43, %v39
    %vm47 = vcmask 58368
    %48 = vst.msk [vmem:[#allocation5] sm:$0x3] %vm47, %v45
    // Predicated region
    $region10: #{tpu_custom_call.1} parent=1 // pred_check
      _
    $region11: #{tpu_custom_call.1} parent=1 // pred_check_branch
      %50 = sbr.rel (0) target = $region13
    $region12: #{tpu_custom_call.1} parent=1 // pred_region
      %s52 = ssub.s32 32, 32
      %53 = vsyncadd [#allocation4], %s52
      %s55 = sshll.u32 [#allocation5], 4
      %s56 = int_to_ptr.vmem [resolvable:$true] %s55
      %58 = dma.vmem_to_hbm [thread:$0]  %s56, 32, %s1, [#allocation4]
    $region13: #{tpu_custom_call.1} parent=1 // pred_fallthru
      _
    // Predicated region
    $region14: #{tpu_custom_call.1} parent=1 // pred_check
      _
    $region15: #{tpu_custom_call.1} parent=1 // pred_check_branch
      %60 = sbr.rel (0) target = $region17
    $region16: #{tpu_custom_call.1} parent=1 // pred_region
      %61 = dma.done [#allocation4], 32
    $region17: #{tpu_custom_call.1} parent=1 // pred_fallthru
      _
    %62 = vsyncpa [#allocation3], 1
    %63 = vsyncpa [#allocation4], 1

</llo_original>
